<compile_context>
chip_gen: v6e
topology: v6e:2x2x1
jax: 0.10.0
libtpu: 0.0.40
codegen_flags: <defaults>
</compile_context>

<pallas_src>
import functools
import math

import jax
import jax.numpy as jnp
from jax.experimental import pallas as pl
from jax.experimental.pallas import tpu as pltpu


# Fits v7x's 64 MiB physical VMEM with headroom; above the 32 MiB scoped default on v6e.
_VMEM_LIMIT = 48 * 1024 * 1024


def _pick_tile(n, target, align):
    """Largest divisor of n that is <= target and a multiple of `align` (or == n)."""
    best = None
    for d in range(1, n + 1):
        if n % d == 0 and d <= target and (d % align == 0 or d == n):
            best = d
    return best if best is not None else n


def _pick_q_tile(t, head_dim, itemsize, budget=40 * 1024 * 1024, target=512):
    """Largest query tile (divisor of T, multiple of 8) whose per-step VMEM fits budget."""
    cands = sorted(d for d in range(1, t + 1) if t % d == 0 and (d % 8 == 0 or d == t))
    best = cands[0]
    for tq in cands:
        if tq > target:
            break
        per_step = (2 * (tq * head_dim * itemsize          # Q tile (double-buffered)
                         + 2 * t * head_dim * itemsize     # K, V blocks
                         + tq * head_dim * 4               # context output block
                         + tq * t * 4)                     # attention-score output block
                    + 3 * tq * t * 4)                      # f32 temporaries (s / e / p)
        if per_step <= budget:
            best = tq
    return best


# ----------------------------------------------------------------------------- linear --
def _linear_kernel(x_ref, w_ref, o_ref):
    o_ref[...] = jnp.dot(x_ref[...], w_ref[...],
                         preferred_element_type=jnp.float32).astype(o_ref.dtype)


def _linear_bias_kernel(x_ref, w_ref, b_ref, o_ref):
    acc = jnp.dot(x_ref[...], w_ref[...], preferred_element_type=jnp.float32)
    o_ref[...] = (acc + b_ref[...].astype(jnp.float32)).astype(o_ref.dtype)


def _linear(x, w, b=None, *, out_dtype=None):
    """y = x @ w (+ b). x: (rows, d_in), w: (d_in, d_out), b: (d_out,) or None."""
    rows, d_in = x.shape
    d_out = w.shape[1]
    out_dtype = out_dtype if out_dtype is not None else x.dtype
    tm = _pick_tile(rows, 512, 8)      # sublane tile
    tn = _pick_tile(d_out, 512, 128)   # lane tile (keeps stores unmasked)
    grid = (rows // tm, d_out // tn)

    x_spec = pl.BlockSpec((tm, d_in), lambda i, j: (i, 0))
    w_spec = pl.BlockSpec((d_in, tn), lambda i, j: (0, j))
    o_spec = pl.BlockSpec((tm, tn), lambda i, j: (i, j))
    out_shape = jax.ShapeDtypeStruct((rows, d_out), out_dtype)
    params = pltpu.CompilerParams(dimension_semantics=("parallel", "parallel"),
                                  vmem_limit_bytes=_VMEM_LIMIT)

    if b is None:
        return pl.pallas_call(
            _linear_kernel, out_shape=out_shape,
            grid_spec=pltpu.PrefetchScalarGridSpec(
                num_scalar_prefetch=0, grid=grid,
                in_specs=[x_spec, w_spec], out_specs=o_spec),
            compiler_params=params,
        )(x, w)

    b2d = b.reshape(1, d_out)
    b_spec = pl.BlockSpec((1, tn), lambda i, j: (0, j))
    return pl.pallas_call(
        _linear_bias_kernel, out_shape=out_shape,
        grid_spec=pltpu.PrefetchScalarGridSpec(
            num_scalar_prefetch=0, grid=grid,
            in_specs=[x_spec, w_spec, b_spec], out_specs=o_spec),
        compiler_params=params,
    )(x, w, b2d)


# -------------------------------------------------------------------------- attention --
def _attention_kernel(q_ref, k_ref, v_ref, ctx_ref, att_ref, *, scale, use_mask, q_tile):
    """One grid step == one (batch, head, query-tile). All blocks are lane-dense."""
    q = q_ref[0, 0]            # (TQ, Dh)
    k = k_ref[0, 0]            # (T,  Dh)
    v = v_ref[0, 0]            # (T,  Dh)

    # Scores: contract the head_dim axes directly (no k.T through the XLU).
    s = jax.lax.dot_general(q, k, (((1,), (1,)), ((), ())),
                            preferred_element_type=jnp.float32) * scale   # (TQ, T)

    if use_mask:
        qt = pl.program_id(2)
        row = jax.lax.broadcasted_iota(jnp.int32, s.shape, 0) + qt * q_tile
        col = jax.lax.broadcasted_iota(jnp.int32, s.shape, 1)
        # Large finite sentinel instead of -inf: avoids inf-inf -> NaN if the mask is
        # ever generalized beyond pure-causal.
        s = jnp.where(col > row, jnp.float32(-1e30), s)

    # Numerically stable softmax along the key axis.
    s_max = jnp.max(s, axis=-1, keepdims=True)
    e = jnp.exp(s - s_max)
    denom = jnp.sum(e, axis=-1, keepdims=True)
    p = e * pl.reciprocal(denom, approx=True)                # EUP slot, essentially free

    att_ref[0, 0] = p.astype(att_ref.dtype)                                 # (TQ, T)
    ctx_ref[0, 0] = jnp.dot(p.astype(v.dtype), v,
                            preferred_element_type=jnp.float32).astype(ctx_ref.dtype)


def _attention(qh, kh, vh, *, use_mask, score_dtype=jnp.float32):
    """qh/kh/vh: (B, H, T, Dh). Returns context (B,H,T,Dh) and probs (B,H,T,T)."""
    B, H, T, Dh = qh.shape
    tq = _pick_q_tile(T, Dh, qh.dtype.itemsize)
    scale = 1.0 / math.sqrt(float(Dh))
    kernel = functools.partial(_attention_kernel, scale=scale,
                               use_mask=use_mask, q_tile=tq)

    return pl.pallas_call(
        kernel,
        out_shape=(jax.ShapeDtypeStruct((B, H, T, Dh), qh.dtype),
                   jax.ShapeDtypeStruct((B, H, T, T), score_dtype)),
        grid_spec=pltpu.PrefetchScalarGridSpec(
            num_scalar_prefetch=0,
            grid=(B, H, T // tq),
            in_specs=[
                pl.BlockSpec((1, 1, tq, Dh), lambda b, h, q: (b, h, q, 0)),   # Q tile
                pl.BlockSpec((1, 1, T, Dh), lambda b, h, q: (b, h, 0, 0)),    # K (full)
                pl.BlockSpec((1, 1, T, Dh), lambda b, h, q: (b, h, 0, 0)),    # V (full)
            ],
            out_specs=[
                pl.BlockSpec((1, 1, tq, Dh), lambda b, h, q: (b, h, q, 0)),   # context
                pl.BlockSpec((1, 1, tq, T), lambda b, h, q: (b, h, q, 0)),    # probs
            ],
        ),
        compiler_params=pltpu.CompilerParams(
            # All axes independent -> shards across both v7x TensorCores even for B=1.
            dimension_semantics=("parallel", "parallel", "parallel"),
            vmem_limit_bytes=_VMEM_LIMIT),
    )(qh, kh, vh)


# ---------------------------------------------------------------------------- wrapper --
def multi_head_attention(Q, K, V, wq, wk, wv, wo, bo, *, n_heads, head_dim,
                         use_mask=False, compute_dtype=None):
    """Q, K, V: (B, T, d_model). Weights stored (in, out). Returns (ctx, attn_probs).

    compute_dtype=jnp.bfloat16 enables the fast MXU path (f32 accumulation kept);
    default keeps the input dtype for bit-for-bit-ish parity with the reference.
    """
    B, T, d_model = Q.shape
    inner = n_heads * head_dim
    out_dtype = Q.dtype
    cdt = jnp.dtype(compute_dtype) if compute_dtype is not None else Q.dtype

    Qc, Kc, Vc = (x.astype(cdt) for x in (Q, K, V))
    wqc, wkc, wvc, woc = (w.astype(cdt) for w in (wq, wk, wv, wo))

    rows = B * T

    # Stage 1: QKV projections -- done exactly once, outside the attention grid.
    q2d = _linear(Qc.reshape(rows, d_model), wqc)
    k2d = _linear(Kc.reshape(rows, d_model), wkc)
    v2d = _linear(Vc.reshape(rows, d_model), wvc)

    # One-time XLA head split so the attention kernel indexes heads via the grid
    # (no sub-128-lane slicing / masked partial stores in the kernel).
    def split(x):
        return x.reshape(B, T, n_heads, head_dim).transpose(0, 2, 1, 3)

    ctx_h, attn = _attention(split(q2d), split(k2d), split(v2d), use_mask=use_mask)

    # Head merge + output projection (with bias).
    ctx2d = ctx_h.transpose(0, 2, 1, 3).reshape(rows, inner)
    out2d = _linear(ctx2d, woc, bo.astype(cdt), out_dtype=out_dtype)
    return out2d.reshape(B, T, inner), attn


# -------------------------------------------------------------------------- reference --
def _reference(Q, K, V, wq, wk, wv, wo, bo, *, n_heads, head_dim, use_mask):
    """Pure-JAX reference mirroring the PyTorch forward."""
    B, T, _ = Q.shape
    q = (Q @ wq).reshape(B, T, n_heads, head_dim).transpose(0, 2, 1, 3)
    k = (K @ wk).reshape(B, T, n_heads, head_dim).transpose(0, 2, 1, 3)
    v = (V @ wv).reshape(B, T, n_heads, head_dim).transpose(0, 2, 1, 3)
    s = jnp.einsum("bhtd,bhsd->bhts", q, k) / math.sqrt(float(head_dim))
    if use_mask:
        mask = jnp.triu(jnp.ones((T, T), bool), k=1)
        s = jnp.where(mask, -jnp.inf, s)
    w = jax.nn.softmax(s, axis=-1)
    ctx = jnp.einsum("bhts,bhsd->bhtd", w, v).transpose(0, 2, 1, 3)
    ctx = ctx.reshape(B, T, n_heads * head_dim)
    ctx = ctx @ wo + bo
    return ctx, w


if __name__ == "__main__":
    batch, seq_len, d_model = 2, 8, 32
    n_heads, head_dim = 4, 8
    inner = n_heads * head_dim

    key = jax.random.PRNGKey(0)
    kq, kk, kv, kwq, kwk, kwv, kwo, kbo = jax.random.split(key, 8)

    Q = jax.random.normal(kq, (batch, seq_len, d_model), jnp.float32)
    K = jax.random.normal(kk, (batch, seq_len, d_model), jnp.float32)
    V = jax.random.normal(kv, (batch, seq_len, d_model), jnp.float32)

    wq = jax.random.normal(kwq, (d_model, inner), jnp.float32) * 0.1
    wk = jax.random.normal(kwk, (d_model, inner), jnp.float32) * 0.1
    wv = jax.random.normal(kwv, (d_model, inner), jnp.float32) * 0.1
    wo = jax.random.normal(kwo, (inner, inner), jnp.float32) * 0.1
    bo = jax.random.normal(kbo, (inner,), jnp.float32) * 0.1

    for use_mask in (False, True):
        ctx, attn = multi_head_attention(Q, K, V, wq, wk, wv, wo, bo,
                                         n_heads=n_heads, head_dim=head_dim,
                                         use_mask=use_mask)
        jax.block_until_ready((ctx, attn))

        ctx_ref, attn_ref = _reference(Q, K, V, wq, wk, wv, wo, bo,
                                       n_heads=n_heads, head_dim=head_dim,
                                       use_mask=use_mask)
        assert ctx.shape == (batch, seq_len, inner)
        assert attn.shape == (batch, n_heads, seq_len, seq_len)
        # Tolerances account for pl.reciprocal(approx=True) in the softmax normalizer.
        assert jnp.allclose(attn, attn_ref, atol=2e-3, rtol=2e-3), f"attn mismatch (mask={use_mask})"
        assert jnp.allclose(ctx, ctx_ref, atol=5e-3, rtol=5e-3), f"ctx mismatch (mask={use_mask})"

    print("KERNEL_OK")
</pallas_src>

<mosaic_0001>
module attributes {stable_mosaic.version = 11 : i64} {
  func.func @_linear_kernel(%arg0: i32, %arg1: i32, %arg2: memref<16x32xf32, #tpu.memory_space<vmem>>, %arg3: memref<32x32xf32, #tpu.memory_space<vmem>>, %arg4: memref<16x32xf32, #tpu.memory_space<vmem>>) attributes {dimension_semantics = [#tpu.dimension_semantics<parallel>, #tpu.dimension_semantics<parallel>], iteration_bounds = array<i64: 1, 1>, scalar_prefetch = 0 : i64, scratch_operands = 0 : i64, tpu.core_type = #tpu.core_type<tc>, window_params = [{transform_indices = @transform_0, window_bounds = array<i64: 16, 32>}, {transform_indices = @transform_1, window_bounds = array<i64: 32, 32>}, {transform_indices = @transform_2, window_bounds = array<i64: 16, 32>}]} {
    %c0 = arith.constant 0 : index
    %c0_0 = arith.constant 0 : index
    %0 = vector.load %arg2[%c0, %c0_0] : memref<16x32xf32, #tpu.memory_space<vmem>>, vector<16x32xf32>
    %c0_1 = arith.constant 0 : index
    %c0_2 = arith.constant 0 : index
    %1 = vector.load %arg3[%c0_1, %c0_2] : memref<32x32xf32, #tpu.memory_space<vmem>>, vector<32x32xf32>
    %cst = arith.constant dense<0.000000e+00> : vector<16x32xf32>
    %2 = tpu.matmul %0, %1, %cst {dimension_numbers = #tpu.dot_dimension_numbers<[1], [0], [0], [1], [0, 0, 1, 1], [], []>} : vector<16x32xf32>, vector<32x32xf32>, vector<16x32xf32> -> vector<16x32xf32>
    %c0_3 = arith.constant 0 : index
    %c0_4 = arith.constant 0 : index
    %3 = vector.load %arg4[%c0_3, %c0_4] : memref<16x32xf32, #tpu.memory_space<vmem>>, vector<16x32xf32>
    tpu.vector_store %arg4[%c0_3, %c0_4], %2 {strides = array<i32>} : memref<16x32xf32, #tpu.memory_space<vmem>>, vector<16x32xf32>,
    return
  }
  func.func @transform_0(%arg0: i32, %arg1: i32) -> (i32, i32) {
    %c0_i32 = arith.constant 0 : i32
    %c0_i32_0 = arith.constant 0 : i32
    return %arg0, %c0_i32 : i32, i32
  }
  func.func @transform_1(%arg0: i32, %arg1: i32) -> (i32, i32) {
    %c0_i32 = arith.constant 0 : i32
    %c0_i32_0 = arith.constant 0 : i32
    return %c0_i32, %arg1 : i32, i32
  }
  func.func @transform_2(%arg0: i32, %arg1: i32) -> (i32, i32) {
    %c0_i32 = arith.constant 0 : i32
    return %arg0, %arg1 : i32, i32
  }
}

</mosaic_0001>

<llo_original>
// kernel: tpu_custom_call.1
$region0: #{tpu_custom_call.1}
  #allocation0 [shape = 'u32[]', space=smem, size = 0x4, offset = 0x4, fixed_abs, tag = 'smem constant byte address 0x4 - core index']
  #allocation1 [shape = 'u32[144,128]{1,0:T(1,128)}', space=vmem, size = 0x12000, scoped, tag = 'internal scratch']
  %s0 = inlined_call_operand.hbm [shape: f32[16,32], index: 0, kind: input, shape index: {}]
  %s1 = inlined_call_operand.hbm [shape: f32[32,32], index: 1, kind: input, shape index: {}]
  %s2 = inlined_call_operand.hbm [shape: f32[16,32], index: 2, kind: output, shape index: {}]
  %s3 = sld [smem:[#allocation0]]
  $region26: #{tpu_custom_call.1} parent=0
    _
  %s5 = ssub.s32 1, %s3
  %s6 = scalar_select 0, %s5, %s3
  $region1: #{tpu_custom_call.1} parent=0
    #allocation2 [shape = 'u8[8192]{0}', space=vmem, size = 0x2000, scoped, tag = 'input window, operand 0, single buffered']
    #allocation3 [shape = 's32[1]{0}', space=sflag, size = 0x4, scoped, tag = 'scoped memory for tpu_custom_call.1']
    #allocation4 [shape = 's32[1]{0}', space=sflag, size = 0x4, scoped, tag = 'scoped memory for tpu_custom_call.1']
    #allocation5 [shape = 'u8[16384]{0}', space=vmem, size = 0x4000, scoped, tag = 'input window, operand 1, single buffered']
    #allocation6 [shape = 's32[1]{0}', space=sflag, size = 0x4, scoped, tag = 'scoped memory for tpu_custom_call.1']
    #allocation7 [shape = 'u8[8192]{0}', space=vmem, size = 0x2000, scoped, tag = 'output window, operand 0, single buffered']
    %7 = vsyncpa [#allocation3], 0
    %8 = vsyncpa [#allocation6], 0
    %9 = vsyncpa [#allocation4], 0
    // Predicated region
    $region2: #{tpu_custom_call.1} parent=1 // pred_check
      _
    $region3: #{tpu_custom_call.1} parent=1 // pred_check_branch
      %11 = sbr.rel (0) target = $region5
    $region4: #{tpu_custom_call.1} parent=1 // pred_region
      %s13 = ssub.s32 256, 256
      %14 = vsyncadd [#allocation3], %s13
      %s15 = sshll.u32 [#allocation2], 4
      %s16 = int_to_ptr.vmem [resolvable:$true] %s15
      %21 = dma.hbm_to_vmem [thread:$0]  %s0, 256, %s16, [#allocation3], 128, 128, 8
    $region5: #{tpu_custom_call.1} parent=1 // pred_fallthru
      _
    // Predicated region
    $region6: #{tpu_custom_call.1} parent=1 // pred_check
      _
    $region7: #{tpu_custom_call.1} parent=1 // pred_check_branch
      %23 = sbr.rel (0) target = $region9
    $region8: #{tpu_custom_call.1} parent=1 // pred_region
      %s25 = ssub.s32 512, 512
      %26 = vsyncadd [#allocation6], %s25
      %s27 = sshll.u32 [#allocation5], 4
      %s28 = int_to_ptr.vmem [resolvable:$true] %s27
      %33 = dma.hbm_to_vmem [thread:$0]  %s1, 512, %s28, [#allocation6], 128, 128, 8
    $region9: #{tpu_custom_call.1} parent=1 // pred_fallthru
      _
    // Predicated region
    $region10: #{tpu_custom_call.1} parent=1 // pred_check
      _
    $region11: #{tpu_custom_call.1} parent=1 // pred_check_branch
      %35 = sbr.rel (0) target = $region13
    $region12: #{tpu_custom_call.1} parent=1 // pred_region
      %36 = dma.done [#allocation3], 256
    $region13: #{tpu_custom_call.1} parent=1 // pred_fallthru
      _
    // Predicated region
    $region14: #{tpu_custom_call.1} parent=1 // pred_check
      _
    $region15: #{tpu_custom_call.1} parent=1 // pred_check_branch
      %38 = sbr.rel (0) target = $region17
    $region16: #{tpu_custom_call.1} parent=1 // pred_region
      %39 = dma.done [#allocation6], 512
    $region17: #{tpu_custom_call.1} parent=1 // pred_fallthru
      _
    %v40 = vld [vmem:[#allocation2] sm:$0xff]
    %v41 = vld [vmem:[#allocation2 + $0x8] sm:$0xff]
    %v42 = vld [vmem:[#allocation5] sm:$0xff]
    %v43 = vld [vmem:[#allocation5 + $0x8] sm:$0xff]
    %v44 = vld [vmem:[#allocation5 + $0x10] sm:$0xff]
    %v45 = vld [vmem:[#allocation5 + $0x18] sm:$0xff]
    %vm46 = vcmask 261120
    %v48 = vsel %vm46, %v40, 0
    %v51 = vsel %vm46, %v41, 0
    %53 = vmatprep.subr.mxu0 0.0
    %54 = vmatpush1.msra.mxu0 0.0
    %55 = vmatprep.subr.mxu0 0.0
    %56 = vmatpush1.msra.mxu0 0.0
    %57 = vmatprep.subr.mxu0 0.0
    %58 = vmatpush1.msra.mxu0 0.0
    %59 = vmatprep.subr.mxu0 0.0
    %60 = vmatpush1.msra.mxu0 0.0
    %61 = vmatprep.subr.mxu0 0.0
    %62 = vmatpush1.msra.mxu0 0.0
    %63 = vmatprep.subr.mxu0 0.0
    %64 = vmatpush1.msra.mxu0 0.0
    %65 = vmatprep.subr.mxu0 0.0
    %66 = vmatpush1.msra.mxu0 0.0
    %67 = vmatprep.subr.mxu0 0.0
    %68 = vmatpush1.msra.mxu0 0.0
    %69 = vmatprep.subr.mxu0 0.0
    %70 = vmatpush1.msra.mxu0 0.0
    %71 = vmatprep.subr.mxu0 0.0
    %72 = vmatpush1.msra.mxu0 0.0
    %73 = vmatprep.subr.mxu0 0.0
    %74 = vmatpush1.msra.mxu0 0.0
    %75 = vmatprep.subr.mxu0 0.0
    %76 = vmatpush1.msra.mxu0 0.0
    %77 = vmatprep.subr.mxu0 0.0
    %78 = vmatpush1.msra.mxu0 %v45
    %79 = vmatprep.subr.mxu0 0.0
    %80 = vmatpush1.msra.mxu0 %v44
    %81 = vmatprep.subr.mxu0 0.0
    %82 = vmatpush1.msra.mxu0 %v43
    %83 = vmatprep.subr.mxu0 0.0
    %84 = vmatpush1.msra.mxu0 %v42
    %85 = vmatprep.subr.mxu0 0.0
    %86 = vmatpush2.msra.mxu0 0.0
    %87 = vmatprep.subr.mxu0 0.0
    %88 = vmatpush2.msra.mxu0 0.0
    %89 = vmatprep.subr.mxu0 0.0
    %90 = vmatpush2.msra.mxu0 0.0
    %91 = vmatprep.subr.mxu0 0.0
    %92 = vmatpush2.msra.mxu0 0.0
    %93 = vmatprep.subr.mxu0 0.0
    %94 = vmatpush2.msra.mxu0 0.0
    %95 = vmatprep.subr.mxu0 0.0
    %96 = vmatpush2.msra.mxu0 0.0
    %97 = vmatprep.subr.mxu0 0.0
    %98 = vmatpush2.msra.mxu0 0.0
    %99 = vmatprep.subr.mxu0 0.0
    %100 = vmatpush2.msra.mxu0 0.0
    %101 = vmatprep.subr.mxu0 0.0
    %102 = vmatpush2.msra.mxu0 0.0
    %103 = vmatprep.subr.mxu0 0.0
    %104 = vmatpush2.msra.mxu0 0.0
    %105 = vmatprep.subr.mxu0 0.0
    %106 = vmatpush2.msra.mxu0 0.0
    %107 = vmatprep.subr.mxu0 0.0
    %108 = vmatpush2.msra.mxu0 0.0
    %109 = vmatprep.subr.mxu0 0.0
    %110 = vmatpush2.msra.mxu0 0.0
    %111 = vmatprep.subr.mxu0 0.0
    %112 = vmatpush2.msra.mxu0 0.0
    %113 = vmatprep.subr.mxu0 0.0
    %114 = vmatpush2.msra.mxu0 0.0
    %115 = vmatprep.subr.mxu0 0.0
    %116 = vmatpush2.msra.mxu0 0.0
    %117 = vmatprep.mubr.f32.mxu0 0.0
    %118 = vmatmul.mubr.f32.gmra.mxu0 %v48
    %v119 = vpop.f32.mrf.mxu0
    %v120 = vadd.f32 0.0, %v119
    %v121 = vpop.f32.mrf.mxu0
    %122 = vmatprep.mubr.f32.mxu0 0.0
    %123 = vmatmul.mubr.f32.gmra.mxu0 %v51
    %v124 = vpop.f32.mrf.mxu0
    %v125 = vadd.f32 0.0, %v124
    %v126 = vpop.f32.mrf.mxu0
    %127 = vdwg.mxu0
    %128 = vst.msk [vmem:[#allocation7] sm:$0xff] %vm46, %v120
    %129 = vst.msk [vmem:[#allocation7 + $0x8] sm:$0xff] %vm46, %v125
    // Predicated region
    $region18: #{tpu_custom_call.1} parent=1 // pred_check
      _
    $region19: #{tpu_custom_call.1} parent=1 // pred_check_branch
      %131 = sbr.rel (0) target = $region21
    $region20: #{tpu_custom_call.1} parent=1 // pred_region
      %s133 = ssub.s32 256, 256
      %134 = vsyncadd [#allocation4], %s133
      %s135 = sshll.u32 [#allocation7], 4
      %s136 = int_to_ptr.vmem [resolvable:$true] %s135
      %141 = dma.vmem_to_hbm [thread:$0]  %s136, 256, %s2, [#allocation4], 128, 128, 8
    $region21: #{tpu_custom_call.1} parent=1 // pred_fallthru
      _
    // Predicated region
    $region22: #{tpu_custom_call.1} parent=1 // pred_check
      _
    $region23: #{tpu_custom_call.1} parent=1 // pred_check_branch
      %143 = sbr.rel (0) target = $region25
    $region24: #{tpu_custom_call.1} parent=1 // pred_region
      %144 = dma.done [#allocation4], 256
    $region25: #{tpu_custom_call.1} parent=1 // pred_fallthru
      _
    %145 = vsyncpa [#allocation3], 1
    %146 = vsyncpa [#allocation6], 1
    %147 = vsyncpa [#allocation4], 1

</llo_original>
